<compile_context>
chip_gen: v5e
topology: v5e:2x2
jax: 0.10.0
libtpu: 0.0.40
codegen_flags: <defaults>
</compile_context>

<pallas_src>
import functools

import jax
import jax.numpy as jnp
from jax.experimental import pallas as pl
from jax.experimental.pallas import tpu as pltpu

LANE = 128


def _round_up(n, m):
    return ((n + m - 1) // m) * m


def repara_kernel(xT_ref, w1_ref, b1_ref, w2_ref, b2_ref, wp_ref, bp_ref,
                  epsT_ref, out_ref):
    """One batch tile (batch on lanes) of the Repara forward pass.

    xT_ref  : (dim_emb, TILE_B)    bf16  — matmul RHS
    w1_ref  : (hidden, dim_emb)    bf16  — resident
    w2_ref  : (latent, hidden)     bf16  — resident
    wp_ref  : (2*latent, latent)   f32   — fused [W_mu ; W_logvar], resident
    b*_ref  : (out, 1)             f32   — resident, broadcast across lanes
    epsT_ref: (latent, TILE_B)     f32   — gaussian noise
    out_ref : (3*latent, TILE_B)   f32   — packed [z ; mu ; logvar]
    """
    latent = epsT_ref.shape[0]

    # Hoist bias reads (once per grid step).
    b1 = b1_ref[...]
    b2 = b2_ref[...]
    bp = bp_ref[...]

    # linearelu: Linear -> ReLU -> Linear -> ReLU  (bf16 MXU, f32 accumulate,
    # f32 elementwise; all ops lane-dense since TILE_B sits on lanes).
    h = jnp.dot(w1_ref[...], xT_ref[...], preferred_element_type=jnp.float32)
    h = jnp.maximum(h + b1, 0.0)

    l = jnp.dot(w2_ref[...], h.astype(w2_ref.dtype),
                preferred_element_type=jnp.float32)
    l = jnp.maximum(l + b2, 0.0)

    # Fused gaussian_param_projection: one matmul producing [mu ; logvar].
    # Kept in f32 operands (MXU-negligible at this size, tighter logvar).
    p = jnp.dot(wp_ref[...], l, preferred_element_type=jnp.float32) + bp
    mu = p[:latent, :]
    logvar = p[latent:, :]

    # reparameterize: z = mu + eps * exp(0.5 * logvar)   (exp on the EUP)
    z = mu + epsT_ref[...] * jnp.exp(0.5 * logvar)

    # Packed, sublane-aligned, lane-dense stores: rows [0:L) = z,
    # rows [L:3L) = [mu | logvar].  One output DMA stream per grid step.
    out_ref[:latent, :] = z.astype(out_ref.dtype)
    out_ref[latent:, :] = p.astype(out_ref.dtype)


def repara_forward(x, params, eps, *, tile_b=4096, compute_dtype=jnp.bfloat16):
    """x: (B, dim_emb); eps: (B, latent); params: PyTorch-layout weights
    (out_features, in_features) and biases (out_features, 1).
    Returns (z, mu, logvar), each (B, latent) f32."""
    B, dim_emb = x.shape
    latent = eps.shape[-1]

    cd = compute_dtype
    w1 = params["w1"].astype(cd)
    w2 = params["w2"].astype(cd)
    # Fuse mu / logvar projections along the output (sublane) axis.
    wp = jnp.concatenate([params["w_mu"], params["w_lv"]], axis=0).astype(jnp.float32)
    b1 = params["b1"].astype(jnp.float32)
    b2 = params["b2"].astype(jnp.float32)
    bp = jnp.concatenate([params["b_mu"], params["b_lv"]], axis=0).astype(jnp.float32)

    # Batch tiling: batch lives on the lane axis -> tile must be a multiple of
    # 128.  Cap the tile so the grid keeps >= 2 equal-size parallel steps when
    # the batch allows (engages both TensorCores on v7x); otherwise use one
    # full-batch step.  Padding is only up to the tile multiple.
    b_lane = _round_up(B, LANE)
    if b_lane >= 2 * LANE:
        max_tile = _round_up(pl.cdiv(b_lane, 2), LANE)
    else:
        max_tile = b_lane
    tile = min(_round_up(max(int(tile_b), 1), LANE), max_tile)
    b_pad = _round_up(B, tile)

    if b_pad != B:
        x = jnp.pad(x, ((0, b_pad - B), (0, 0)))
        eps = jnp.pad(eps, ((0, b_pad - B), (0, 0)))
    # Pad + transpose + cast fuse into one wrapper-side copy.
    xT = x.T.astype(cd)                       # (dim_emb, b_pad)
    epsT = eps.T.astype(jnp.float32)          # (latent, b_pad)

    grid = (b_pad // tile,)

    def batched(rows):
        return pl.BlockSpec((rows, tile), lambda i: (0, i))

    def resident(arr):
        # Full-array block, constant index_map -> stays pinned in VMEM.
        return pl.BlockSpec(arr.shape, lambda i: (0, 0))

    outT = pl.pallas_call(
        repara_kernel,
        out_shape=jax.ShapeDtypeStruct((3 * latent, b_pad), jnp.float32),
        grid=grid,
        in_specs=[
            batched(dim_emb),                 # x^T   (tiled over batch lanes)
            resident(w1), resident(b1),
            resident(w2), resident(b2),
            resident(wp), resident(bp),
            batched(latent),                  # eps^T (tiled over batch lanes)
        ],
        out_specs=batched(3 * latent),        # packed [z ; mu ; logvar]^T
        compiler_params=pltpu.CompilerParams(
            dimension_semantics=("parallel",)),   # megacore on v7x
    )(xT, w1, b1, w2, b2, wp, bp, epsT)

    out = outT[:, :B].T                       # (B, 3*latent)
    z = out[:, :latent]
    mu = out[:, latent:2 * latent]
    logvar = out[:, 2 * latent:]
    return z, mu, logvar


def init_params(key, dim_emb, hidden_sizes, latent_size):
    """Deterministic synthetic parameters; PyTorch layout: W is (out, in),
    b is (out, 1)."""
    ks = jax.random.split(key, 8)

    def lin(kw, kb, fan_in, fan_out):
        bound = 1.0 / float(fan_in) ** 0.5
        w = jax.random.uniform(kw, (fan_out, fan_in), jnp.float32, -bound, bound)
        b = jax.random.uniform(kb, (fan_out, 1), jnp.float32, -bound, bound)
        return w, b

    w1, b1 = lin(ks[0], ks[1], dim_emb, hidden_sizes)
    w2, b2 = lin(ks[2], ks[3], hidden_sizes, latent_size)
    w_mu, b_mu = lin(ks[4], ks[5], latent_size, latent_size)
    w_lv, b_lv = lin(ks[6], ks[7], latent_size, latent_size)
    return dict(w1=w1, b1=b1, w2=w2, b2=b2,
                w_mu=w_mu, b_mu=b_mu, w_lv=w_lv, b_lv=b_lv)


def repara_reference(x, params, eps, compute_dtype=None):
    """Pure-JAX reference. With compute_dtype=bf16 it mirrors the kernel's
    math (bf16 operands for the two hidden layers, f32 projection, f32
    accumulation); with None it is the original f32 forward of the module."""
    def mm(a, w, use_cd):
        if use_cd and compute_dtype is not None:
            a = a.astype(compute_dtype)
            w = w.astype(compute_dtype)
        return jnp.dot(a, w.T, preferred_element_type=jnp.float32)

    h = jnp.maximum(mm(x, params["w1"], True) + params["b1"].T, 0.0)
    l = jnp.maximum(mm(h, params["w2"], True) + params["b2"].T, 0.0)
    wp = jnp.concatenate([params["w_mu"], params["w_lv"]], axis=0)
    bp = jnp.concatenate([params["b_mu"], params["b_lv"]], axis=0)
    p = mm(l, wp, False) + bp.T               # projection stays f32
    latent = params["w_mu"].shape[0]
    mu, lv = p[:, :latent], p[:, latent:]
    z = mu + eps * jnp.exp(0.5 * lv)
    return z, mu, lv


if __name__ == "__main__":
    # Small shapes consistent with the module; B deliberately not a multiple
    # of 128 (exercises lane padding) and > 2 tiles (exercises the multi-step
    # "parallel" grid).
    B, dim_emb, hidden_sizes, latent_size = 300, 16, 32, 8

    key = jax.random.PRNGKey(0)
    k_param, k_x, k_eps = jax.random.split(key, 3)

    params = init_params(k_param, dim_emb, hidden_sizes, latent_size)
    x = jax.random.normal(k_x, (B, dim_emb), jnp.float32)
    eps = jax.random.normal(k_eps, (B, latent_size), jnp.float32)

    fwd = jax.jit(functools.partial(repara_forward, tile_b=128))
    z, mu, logvar = fwd(x, params, eps)
    jax.block_until_ready((z, mu, logvar))

    # 1) Tight check against a reference that mirrors the kernel math.
    z_r, mu_r, lv_r = repara_reference(x, params, eps, compute_dtype=jnp.bfloat16)
    assert jnp.allclose(z, z_r, atol=5e-3, rtol=5e-3), "z mismatch (bf16 ref)"
    assert jnp.allclose(mu, mu_r, atol=5e-3, rtol=5e-3), "mu mismatch (bf16 ref)"
    assert jnp.allclose(logvar, lv_r, atol=5e-3, rtol=5e-3), "logvar mismatch (bf16 ref)"

    # 2) Loose check against the original f32 module semantics (bf16 hidden
    #    layers introduce ~1% error, hence the relaxed tolerance).
    z_f, mu_f, lv_f = repara_reference(x, params, eps)
    assert jnp.allclose(z, z_f, atol=5e-2, rtol=5e-2), "z mismatch (f32 ref)"
    assert jnp.allclose(mu, mu_f, atol=5e-2, rtol=5e-2), "mu mismatch (f32 ref)"
    assert jnp.allclose(logvar, lv_f, atol=5e-2, rtol=5e-2), "logvar mismatch (f32 ref)"

    print("KERNEL_OK")
</pallas_src>

<mosaic_0001>
module attributes {stable_mosaic.version = 11 : i64} {
  func.func @repara_kernel(%arg0: i32, %arg1: memref<16x128xbf16, #tpu.memory_space<vmem>>, %arg2: memref<32x16xbf16, #tpu.memory_space<vmem>>, %arg3: memref<32x1xf32, #tpu.memory_space<vmem>>, %arg4: memref<8x32xbf16, #tpu.memory_space<vmem>>, %arg5: memref<8x1xf32, #tpu.memory_space<vmem>>, %arg6: memref<16x8xf32, #tpu.memory_space<vmem>>, %arg7: memref<16x1xf32, #tpu.memory_space<vmem>>, %arg8: memref<8x128xf32, #tpu.memory_space<vmem>>, %arg9: memref<24x128xf32, #tpu.memory_space<vmem>>) attributes {dimension_semantics = [#tpu.dimension_semantics<parallel>], iteration_bounds = array<i64: 3>, scalar_prefetch = 0 : i64, scratch_operands = 0 : i64, tpu.core_type = #tpu.core_type<tc>, window_params = [{transform_indices = @transform_0, window_bounds = array<i64: 16, 128>}, {pipeline_mode = #tpu.pipeline_mode<synchronous>, transform_indices = @transform_1, window_bounds = array<i64: 32, 16>}, {pipeline_mode = #tpu.pipeline_mode<synchronous>, transform_indices = @transform_2, window_bounds = array<i64: 32, 1>}, {pipeline_mode = #tpu.pipeline_mode<synchronous>, transform_indices = @transform_3, window_bounds = array<i64: 8, 32>}, {pipeline_mode = #tpu.pipeline_mode<synchronous>, transform_indices = @transform_4, window_bounds = array<i64: 8, 1>}, {pipeline_mode = #tpu.pipeline_mode<synchronous>, transform_indices = @transform_5, window_bounds = array<i64: 16, 8>}, {pipeline_mode = #tpu.pipeline_mode<synchronous>, transform_indices = @transform_6, window_bounds = array<i64: 16, 1>}, {transform_indices = @transform_7, window_bounds = array<i64: 8, 128>}, {transform_indices = @transform_8, window_bounds = array<i64: 24, 128>}]} {
    %c0 = arith.constant 0 : index
    %c0_0 = arith.constant 0 : index
    %0 = vector.load %arg3[%c0, %c0_0] : memref<32x1xf32, #tpu.memory_space<vmem>>, vector<32x1xf32>
    %c0_1 = arith.constant 0 : index
    %c0_2 = arith.constant 0 : index
    %1 = vector.load %arg5[%c0_1, %c0_2] : memref<8x1xf32, #tpu.memory_space<vmem>>, vector<8x1xf32>
    %c0_3 = arith.constant 0 : index
    %c0_4 = arith.constant 0 : index
    %2 = vector.load %arg7[%c0_3, %c0_4] : memref<16x1xf32, #tpu.memory_space<vmem>>, vector<16x1xf32>
    %c0_5 = arith.constant 0 : index
    %c0_6 = arith.constant 0 : index
    %3 = vector.load %arg2[%c0_5, %c0_6] : memref<32x16xbf16, #tpu.memory_space<vmem>>, vector<32x16xbf16>
    %c0_7 = arith.constant 0 : index
    %c0_8 = arith.constant 0 : index
    %4 = vector.load %arg1[%c0_7, %c0_8] : memref<16x128xbf16, #tpu.memory_space<vmem>>, vector<16x128xbf16>
    %cst = arith.constant dense<0.000000e+00> : vector<32x128xf32>
    %5 = tpu.matmul %3, %4, %cst {dimension_numbers = #tpu.dot_dimension_numbers<[1], [0], [0], [1], [0, 0, 1, 1], [], []>} : vector<32x16xbf16>, vector<16x128xbf16>, vector<32x128xf32> -> vector<32x128xf32>
    %6 = vector.broadcast %0 : vector<32x1xf32> to vector<32x128xf32>
    %7 = arith.addf %5, %6 : vector<32x128xf32>
    %cst_9 = arith.constant 0.000000e+00 : f32
    %8 = vector.broadcast %cst_9 : f32 to vector<32x128xf32>
    %9 = arith.maximumf %7, %8 : vector<32x128xf32>
    %c0_10 = arith.constant 0 : index
    %c0_11 = arith.constant 0 : index
    %10 = vector.load %arg4[%c0_10, %c0_11] : memref<8x32xbf16, #tpu.memory_space<vmem>>, vector<8x32xbf16>
    %11 = arith.truncf %9 : vector<32x128xf32> to vector<32x128xbf16>
    %cst_12 = arith.constant dense<0.000000e+00> : vector<8x128xf32>
    %12 = tpu.matmul %10, %11, %cst_12 {dimension_numbers = #tpu.dot_dimension_numbers<[1], [0], [0], [1], [0, 0, 1, 1], [], []>} : vector<8x32xbf16>, vector<32x128xbf16>, vector<8x128xf32> -> vector<8x128xf32>
    %13 = vector.broadcast %1 : vector<8x1xf32> to vector<8x128xf32>
    %14 = arith.addf %12, %13 : vector<8x128xf32>
    %cst_13 = arith.constant 0.000000e+00 : f32
    %15 = vector.broadcast %cst_13 : f32 to vector<8x128xf32>
    %16 = arith.maximumf %14, %15 : vector<8x128xf32>
    %c0_14 = arith.constant 0 : index
    %c0_15 = arith.constant 0 : index
    %17 = vector.load %arg6[%c0_14, %c0_15] : memref<16x8xf32, #tpu.memory_space<vmem>>, vector<16x8xf32>
    %cst_16 = arith.constant dense<0.000000e+00> : vector<16x128xf32>
    %18 = tpu.matmul %17, %16, %cst_16 {dimension_numbers = #tpu.dot_dimension_numbers<[1], [0], [0], [1], [0, 0, 1, 1], [], []>} : vector<16x8xf32>, vector<8x128xf32>, vector<16x128xf32> -> vector<16x128xf32>
    %19 = vector.broadcast %2 : vector<16x1xf32> to vector<16x128xf32>
    %20 = arith.addf %18, %19 : vector<16x128xf32>
    %21 = vector.extract_strided_slice %20 {offsets = [0, 0], sizes = [8, 128], strides = [1, 1]} : vector<16x128xf32> to vector<8x128xf32>
    %22 = vector.extract_strided_slice %20 {offsets = [8, 0], sizes = [8, 128], strides = [1, 1]} : vector<16x128xf32> to vector<8x128xf32>
    %c0_17 = arith.constant 0 : index
    %c0_18 = arith.constant 0 : index
    %23 = vector.load %arg8[%c0_17, %c0_18] : memref<8x128xf32, #tpu.memory_space<vmem>>, vector<8x128xf32>
    %cst_19 = arith.constant 5.000000e-01 : f32
    %24 = vector.broadcast %cst_19 : f32 to vector<8x128xf32>
    %25 = arith.mulf %24, %22 : vector<8x128xf32>
    %26 = math.exp %25 : vector<8x128xf32>
    %27 = arith.mulf %23, %26 : vector<8x128xf32>
    %28 = arith.addf %21, %27 : vector<8x128xf32>
    %c0_20 = arith.constant 0 : index
    %c0_21 = arith.constant 0 : index
    %29 = vector.load %arg9[%c0_20, %c0_21] : memref<24x128xf32, #tpu.memory_space<vmem>>, vector<8x128xf32>
    tpu.vector_store %arg9[%c0_20, %c0_21], %28 {strides = array<i32>} : memref<24x128xf32, #tpu.memory_space<vmem>>, vector<8x128xf32>,
    %c8 = arith.constant 8 : index
    %c0_22 = arith.constant 0 : index
    %30 = vector.load %arg9[%c8, %c0_22] : memref<24x128xf32, #tpu.memory_space<vmem>>, vector<16x128xf32>
    tpu.vector_store %arg9[%c8, %c0_22], %20 {strides = array<i32>} : memref<24x128xf32, #tpu.memory_space<vmem>>, vector<16x128xf32>,
    return
  }
  func.func @transform_0(%arg0: i32) -> (i32, i32) {
    %c0_i32 = arith.constant 0 : i32
    %c0_i32_0 = arith.constant 0 : i32
    return %c0_i32, %arg0 : i32, i32
  }
  func.func @transform_1(%arg0: i32) -> (i32, i32) {
    %c0_i32 = arith.constant 0 : i32
    %c0_i32_0 = arith.constant 0 : i32
    %c0_i32_1 = arith.constant 0 : i32
    return %c0_i32, %c0_i32_0 : i32, i32
  }
  func.func @transform_2(%arg0: i32) -> (i32, i32) {
    %c0_i32 = arith.constant 0 : i32
    %c0_i32_0 = arith.constant 0 : i32
    %c0_i32_1 = arith.constant 0 : i32
    return %c0_i32, %c0_i32_0 : i32, i32
  }
  func.func @transform_3(%arg0: i32) -> (i32, i32) {
    %c0_i32 = arith.constant 0 : i32
    %c0_i32_0 = arith.constant 0 : i32
    %c0_i32_1 = arith.constant 0 : i32
    return %c0_i32, %c0_i32_0 : i32, i32
  }
  func.func @transform_4(%arg0: i32) -> (i32, i32) {
    %c0_i32 = arith.constant 0 : i32
    %c0_i32_0 = arith.constant 0 : i32
    %c0_i32_1 = arith.constant 0 : i32
    return %c0_i32, %c0_i32_0 : i32, i32
  }
  func.func @transform_5(%arg0: i32) -> (i32, i32) {
    %c0_i32 = arith.constant 0 : i32
    %c0_i32_0 = arith.constant 0 : i32
    %c0_i32_1 = arith.constant 0 : i32
    return %c0_i32, %c0_i32_0 : i32, i32
  }
  func.func @transform_6(%arg0: i32) -> (i32, i32) {
    %c0_i32 = arith.constant 0 : i32
    %c0_i32_0 = arith.constant 0 : i32
    %c0_i32_1 = arith.constant 0 : i32
    return %c0_i32, %c0_i32_0 : i32, i32
  }
  func.func @transform_7(%arg0: i32) -> (i32, i32) {
    %c0_i32 = arith.constant 0 : i32
    %c0_i32_0 = arith.constant 0 : i32
    return %c0_i32, %arg0 : i32, i32
  }
  func.func @transform_8(%arg0: i32) -> (i32, i32) {
    %c0_i32 = arith.constant 0 : i32
    %c0_i32_0 = arith.constant 0 : i32
    return %c0_i32, %arg0 : i32, i32
  }
}

</mosaic_0001>

<llo_original>
// kernel: repara_forward.1
$region0: #{repara_forward.1}
  #allocation0 [shape = 'u32[]', space=smem, size = 0x4, offset = 0x4, fixed_abs, tag = 'smem constant byte address 0x4 - core index']
  #allocation1 [shape = 'u32[72,128]{1,0:T(1,128)}', space=vmem, size = 0x9000, scoped, tag = 'internal scratch']
  %s0 = inlined_call_operand.vmem [shape: bf16[16,384], index: 0, kind: input, shape index: {}]
  %s1 = inlined_call_operand.vmem [shape: bf16[32,16], index: 1, kind: input, shape index: {}]
  %s2 = inlined_call_operand.vmem [shape: f32[32,1], index: 2, kind: input, shape index: {}]
  %s3 = inlined_call_operand.vmem [shape: bf16[8,32], index: 3, kind: input, shape index: {}]
  %s4 = inlined_call_operand.vmem [shape: f32[8,1], index: 4, kind: input, shape index: {}]
  %s5 = inlined_call_operand.vmem [shape: f32[16,8], index: 5, kind: input, shape index: {}]
  %s6 = inlined_call_operand.vmem [shape: f32[16,1], index: 6, kind: input, shape index: {}]
  %s7 = inlined_call_operand.vmem [shape: f32[8,384], index: 7, kind: input, shape index: {}]
  %s8 = inlined_call_operand.vmem [shape: f32[24,384], index: 8, kind: output, shape index: {}]
  %s9 = sld [smem:[#allocation0]]
  $region140: #{repara_forward.1} parent=0
    _
  %s11 = ssub.s32 1, %s9
  %s12 = scalar_select 0, %s11, %s9
  $region1: #{repara_forward.1} parent=0
    #allocation2 [shape = 'u8[8192]{0}', space=vmem, size = 0x2000, scoped, tag = 'input window, operand 0']
    #allocation3 [shape = 'u8[24576]{0}', space=vmem, size = 0x6000, scoped, tag = 'output window, operand 0']
    loop: start=0, step=1, limit=5
    $region2: #{repara_forward.1} parent=1 // loop_pre_header
      _
    $region3: #{repara_forward.1} parent=1 // loop_header
      %s14 = sphi 0, %s18
      %p15 = scmp.ge.s32.totalorder %s14, 5
      %s24 = sphi 0, %s26
      %s27 = sphi 0, %s24
      %s28 = sphi 0, %s27
      %s44 = sphi 0, %s28
      %s48 = sphi 0, %s48
      %s50 = sphi 0, %s48
      %s51 = sphi 0, %s50
      %s65 = sphi 0, %s51
      %s69 = sphi 0, %s69
      %s71 = sphi 0, %s69
      %s72 = sphi 0, %s71
      %s86 = sphi 0, %s72
      %s90 = sphi 0, %s90
      %s92 = sphi 0, %s90
      %s93 = sphi 0, %s92
      %s107 = sphi 0, %s93
      %s111 = sphi 0, %s111
      %s113 = sphi 0, %s111
      %s114 = sphi 0, %s113
      %s128 = sphi 0, %s114
      %s132 = sphi 0, %s132
      %s134 = sphi 0, %s132
      %s135 = sphi 0, %s134
      %s149 = sphi 0, %s135
      %s153 = sphi 0, %s153
      %s155 = sphi 0, %s153
      %s156 = sphi 0, %s155
      %s170 = sphi 0, %s156
      %s176 = sphi 0, %s178
      %s179 = sphi 0, %s176
      %s180 = sphi 0, %s179
      %s196 = sphi 0, %s180
      %s202 = sphi 0, %s204
      %s205 = sphi 0, %s202
      %s206 = sphi 0, %s205
      %s222 = sphi 0, %s206
    $region4: #{repara_forward.1} parent=1 // loop_header_branch
      %17 = sbr.rel (%p15) target = $region8
    $region5: #{repara_forward.1} parent=1 // loop_body
      %s19 = ssub.s32 %s14, 1
      %s20 = ssub.s32 %s14, 2
      %s21 = sadd.s32 %s14, 1
      %s22 = ssub.s32 %s14, %s21
      %p23 = scmp.eq.s32.totalorder %s22, 0
      %s25 = sadd.s32 %s24, 1
      %s26 = scalar_select %p23, %s24, %s25
      %p29 = pneg %p23
      %p30 = scmp.eq.s32.totalorder %s14, 2
      %p31 = por %p29, %p30
      %p32 = scmp.ne.s32.totalorder %s24, %s27
      %p33 = scmp.eq.s32.totalorder %s14, 0
      %p34 = por %p32, %p33
      %p35 = scmp.ne.s32.totalorder %s24, %s27
      %p36 = scmp.eq.s32.totalorder %s19, 2
      %p37 = por %p35, %p36
      %p38 = scmp.ne.s32.totalorder %s27, %s28
      %p39 = scmp.eq.s32.totalorder %s19, 0
      %p40 = por %p38, %p39
      %p41 = scmp.ne.s32.totalorder %s27, %s28
      %p42 = scmp.eq.s32.totalorder %s20, 2
      %p43 = por %p41, %p42
      %p45 = scmp.ne.s32.totalorder %s28, %s44
      %p46 = scmp.eq.s32.totalorder %s20, 0
      %p47 = por %p45, %p46
      %s49 = sadd.s32 %s48, 1
      %p52 = scmp.eq.s32.totalorder %s14, 2
      %p53 = scmp.ne.s32.totalorder %s48, %s50
      %p54 = scmp.eq.s32.totalorder %s14, 0
      %p55 = por %p53, %p54
      %p56 = scmp.ne.s32.totalorder %s48, %s50
      %p57 = scmp.eq.s32.totalorder %s19, 2
      %p58 = por %p56, %p57
      %p59 = scmp.ne.s32.totalorder %s50, %s51
      %p60 = scmp.eq.s32.totalorder %s19, 0
      %p61 = por %p59, %p60
      %p62 = scmp.ne.s32.totalorder %s50, %s51
      %p63 = scmp.eq.s32.totalorder %s20, 2
      %p64 = por %p62, %p63
      %p66 = scmp.ne.s32.totalorder %s51, %s65
      %p67 = scmp.eq.s32.totalorder %s20, 0
      %p68 = por %p66, %p67
      %s70 = sadd.s32 %s69, 1
      %p73 = scmp.eq.s32.totalorder %s14, 2
      %p74 = scmp.ne.s32.totalorder %s69, %s71
      %p75 = scmp.eq.s32.totalorder %s14, 0
      %p76 = por %p74, %p75
      %p77 = scmp.ne.s32.totalorder %s69, %s71
      %p78 = scmp.eq.s32.totalorder %s19, 2
      %p79 = por %p77, %p78
      %p80 = scmp.ne.s32.totalorder %s71, %s72
      %p81 = scmp.eq.s32.totalorder %s19, 0
      %p82 = por %p80, %p81
      %p83 = scmp.ne.s32.totalorder %s71, %s72
      %p84 = scmp.eq.s32.totalorder %s20, 2
      %p85 = por %p83, %p84
      %p87 = scmp.ne.s32.totalorder %s72, %s86
      %p88 = scmp.eq.s32.totalorder %s20, 0
      %p89 = por %p87, %p88
      %s91 = sadd.s32 %s90, 1
      %p94 = scmp.eq.s32.totalorder %s14, 2
      %p95 = scmp.ne.s32.totalorder %s90, %s92
      %p96 = scmp.eq.s32.totalorder %s14, 0
      %p97 = por %p95, %p96
      %p98 = scmp.ne.s32.totalorder %s90, %s92
      %p99 = scmp.eq.s32.totalorder %s19, 2
      %p100 = por %p98, %p99
      %p101 = scmp.ne.s32.totalorder %s92, %s93
      %p102 = scmp.eq.s32.totalorder %s19, 0
      %p103 = por %p101, %p102
      %p104 = scmp.ne.s32.totalorder %s92, %s93
      %p105 = scmp.eq.s32.totalorder %s20, 2
      %p106 = por %p104, %p105
      %p108 = scmp.ne.s32.totalorder %s93, %s107
      %p109 = scmp.eq.s32.totalorder %s20, 0
      %p110 = por %p108, %p109
      %s112 = sadd.s32 %s111, 1
      %p115 = scmp.eq.s32.totalorder %s14, 2
      %p116 = scmp.ne.s32.totalorder %s111, %s113
      %p117 = scmp.eq.s32.totalorder %s14, 0
      %p118 = por %p116, %p117
      %p119 = scmp.ne.s32.totalorder %s111, %s113
      %p120 = scmp.eq.s32.totalorder %s19, 2
      %p121 = por %p119, %p120
      %p122 = scmp.ne.s32.totalorder %s113, %s114
      %p123 = scmp.eq.s32.totalorder %s19, 0
      %p124 = por %p122, %p123
      %p125 = scmp.ne.s32.totalorder %s113, %s114
      %p126 = scmp.eq.s32.totalorder %s20, 2
      %p127 = por %p125, %p126
      %p129 = scmp.ne.s32.totalorder %s114, %s128
      %p130 = scmp.eq.s32.totalorder %s20, 0
      %p131 = por %p129, %p130
      %s133 = sadd.s32 %s132, 1
      %p136 = scmp.eq.s32.totalorder %s14, 2
      %p137 = scmp.ne.s32.totalorder %s132, %s134
      %p138 = scmp.eq.s32.totalorder %s14, 0
      %p139 = por %p137, %p138
      %p140 = scmp.ne.s32.totalorder %s132, %s134
      %p141 = scmp.eq.s32.totalorder %s19, 2
      %p142 = por %p140, %p141
      %p143 = scmp.ne.s32.totalorder %s134, %s135
      %p144 = scmp.eq.s32.totalorder %s19, 0
      %p145 = por %p143, %p144
      %p146 = scmp.ne.s32.totalorder %s134, %s135
      %p147 = scmp.eq.s32.totalorder %s20, 2
      %p148 = por %p146, %p147
      %p150 = scmp.ne.s32.totalorder %s135, %s149
      %p151 = scmp.eq.s32.totalorder %s20, 0
      %p152 = por %p150, %p151
      %s154 = sadd.s32 %s153, 1
      %p157 = scmp.eq.s32.totalorder %s14, 2
      %p158 = scmp.ne.s32.totalorder %s153, %s155
      %p159 = scmp.eq.s32.totalorder %s14, 0
      %p160 = por %p158, %p159
      %p161 = scmp.ne.s32.totalorder %s153, %s155
      %p162 = scmp.eq.s32.totalorder %s19, 2
      %p163 = por %p161, %p162
      %p164 = scmp.ne.s32.totalorder %s155, %s156
      %p165 = scmp.eq.s32.totalorder %s19, 0
      %p166 = por %p164, %p165
      %p167 = scmp.ne.s32.totalorder %s155, %s156
      %p168 = scmp.eq.s32.totalorder %s20, 2
      %p169 = por %p167, %p168
      %p171 = scmp.ne.s32.totalorder %s156, %s170
      %p172 = scmp.eq.s32.totalorder %s20, 0
      %p173 = por %p171, %p172
      %s174 = ssub.s32 %s14, %s21
      %p175 = scmp.eq.s32.totalorder %s174, 0
      %s177 = sadd.s32 %s176, 1
      %s178 = scalar_select %p175, %s176, %s177
      %p181 = pneg %p175
      %p182 = scmp.eq.s32.totalorder %s14, 2
      %p183 = por %p181, %p182
      %p184 = scmp.ne.s32.totalorder %s176, %s179
      %p185 = scmp.eq.s32.totalorder %s14, 0
      %p186 = por %p184, %p185
      %p187 = scmp.ne.s32.totalorder %s176, %s179
      %p188 = scmp.eq.s32.totalorder %s19, 2
      %p189 = por %p187, %p188
      %p190 = scmp.ne.s32.totalorder %s179, %s180
      %p191 = scmp.eq.s32.totalorder %s19, 0
      %p192 = por %p190, %p191
      %p193 = scmp.ne.s32.totalorder %s179, %s180
      %p194 = scmp.eq.s32.totalorder %s20, 2
      %p195 = por %p193, %p194
      %p197 = scmp.ne.s32.totalorder %s180, %s196
      %p198 = scmp.eq.s32.totalorder %s20, 0
      %p199 = por %p197, %p198
      %s200 = ssub.s32 %s14, %s21
      %p201 = scmp.eq.s32.totalorder %s200, 0
      %s203 = sadd.s32 %s202, 1
      %s204 = scalar_select %p201, %s202, %s203
      %p207 = pneg %p201
      %p208 = scmp.eq.s32.totalorder %s14, 2
      %p209 = por %p207, %p208
      %p210 = scmp.ne.s32.totalorder %s202, %s205
      %p211 = scmp.eq.s32.totalorder %s14, 0
      %p212 = por %p210, %p211
      %p213 = scmp.ne.s32.totalorder %s202, %s205
      %p214 = scmp.eq.s32.totalorder %s19, 2
      %p215 = por %p213, %p214
      %p216 = scmp.ne.s32.totalorder %s205, %s206
      %p217 = scmp.eq.s32.totalorder %s19, 0
      %p218 = por %p216, %p217
      %p219 = scmp.ne.s32.totalorder %s205, %s206
      %p220 = scmp.eq.s32.totalorder %s20, 2
      %p221 = por %p219, %p220
      %p223 = scmp.ne.s32.totalorder %s206, %s222
      %p224 = scmp.eq.s32.totalorder %s20, 0
      %p225 = por %p223, %p224
      %p226 = scmp.le.s32.totalorder 1, %s14
      %p227 = scmp.lt.s32.totalorder %s14, 4
      %p228 = pnand %p226, %p227
      %p229 = pneg %p228
      // Predicated region
      $region9: #{repara_forward.1} parent=5 // pred_check
        _
      $region10: #{repara_forward.1} parent=5 // pred_check_branch
        %231 = sbr.rel (%p228) target = $region12
      $region11: #{repara_forward.1} parent=5 // pred_region
        %s232 = ssub.s32 %s14, 1
        // Predicated region
        $region13: #{repara_forward.1} parent=11 // pred_check
          %p233 = pneg %p61
        $region14: #{repara_forward.1} parent=11 // pred_check_branch
          %235 = sbr.rel (%p233) target = $region16
        $region15: #{repara_forward.1} parent=11 // pred_region
          _
        $region16: #{repara_forward.1} parent=11 // pred_fallthru
          _
        // Predicated region
        $region17: #{repara_forward.1} parent=11 // pred_check
          %p236 = pneg %p82
        $region18: #{repara_forward.1} parent=11 // pred_check_branch
          %238 = sbr.rel (%p236) target = $region20
        $region19: #{repara_forward.1} parent=11 // pred_region
          _
        $region20: #{repara_forward.1} parent=11 // pred_fallthru
          _
        // Predicated region
        $region21: #{repara_forward.1} parent=11 // pred_check
          %p239 = pneg %p103
        $region22: #{repara_forward.1} parent=11 // pred_check_branch
          %241 = sbr.rel (%p239) target = $region24
        $region23: #{repara_forward.1} parent=11 // pred_region
          _
        $region24: #{repara_forward.1} parent=11 // pred_fallthru
          _
        // Predicated region
        $region25: #{repara_forward.1} parent=11 // pred_check
          %p242 = pneg %p124
        $region26: #{repara_forward.1} parent=11 // pred_check_branch
          %244 = sbr.rel (%p242) target = $region28
        $region27: #{repara_forward.1} parent=11 // pred_region
          _
        $region28: #{repara_forward.1} parent=11 // pred_fallthru
          _
        // Predicated region
        $region29: #{repara_forward.1} parent=11 // pred_check
          %p245 = pneg %p145
        $region30: #{repara_forward.1} parent=11 // pred_check_branch
          %247 = sbr.rel (%p245) target = $region32
        $region31: #{repara_forward.1} parent=11 // pred_region
          _
        $region32: #{repara_forward.1} parent=11 // pred_fallthru
          _
        // Predicated region
        $region33: #{repara_forward.1} parent=11 // pred_check
          %p248 = pneg %p166
        $region34: #{repara_forward.1} parent=11 // pred_check_branch
          %250 = sbr.rel (%p248) target = $region36
        $region35: #{repara_forward.1} parent=11 // pred_region
          _
        $region36: #{repara_forward.1} parent=11 // pred_fallthru
          _
      $region12: #{repara_forward.1} parent=5 // pred_fallthru
        _
      %p251 = scmp.lt.s32.totalorder %s14, 3
      // Predicated region
      $region37: #{repara_forward.1} parent=5 // pred_check
        %p252 = pneg %p251
      $region38: #{repara_forward.1} parent=5 // pred_check_branch
        %254 = sbr.rel (%p252) target = $region40
      $region39: #{repara_forward.1} parent=5 // pred_region
        // Predicated region
        $region41: #{repara_forward.1} parent=39 // pred_check
          %p255 = pneg %p34
        $region42: #{repara_forward.1} parent=39 // pred_check_branch
          %257 = sbr.rel (%p255) target = $region44
        $region43: #{repara_forward.1} parent=39 // pred_region
          %s258 = sand.u32 %s24, 1
          %s259 = sand.u32 %s24, 1
          %s260 = smul.addr %s259, 8
          %s261 = scalar_lea.vmem [#allocation2], %s260
          %s262 = smul.addr %s14, 4
          %s263 = scalar_lea.vmem %s0, %s262
          // Predicated region
          $region45: #{repara_forward.1} parent=43 // pred_check
            _
          $region46: #{repara_forward.1} parent=43 // pred_check_branch
            %265 = sbr.rel (0) target = $region48
          $region47: #{repara_forward.1} parent=43 // pred_region
            // Predicated region
            $region49: #{repara_forward.1} parent=47 // pred_check
              _
            $region50: #{repara_forward.1} parent=47 // pred_check_branch
              %267 = sbr.rel target = $region52
            $region51: #{repara_forward.1} parent=47 // pred_region
              // Predicated region
              $region64: #{repara_forward.1} parent=51 // pred_check
                _
              $region65: #{repara_forward.1} parent=51 // pred_check_branch
                %285 = sbr.rel (0) target = $region67
              $region66: #{repara_forward.1} parent=51 // pred_region
                loop: start=0, step=1, limit=1
                $region68: #{repara_forward.1} parent=66 // loop_pre_header
                  _
                $region69: #{repara_forward.1} parent=66 // loop_header
                  %s287 = sphi 0, %s291
                  %p288 = scmp.ge.s32.totalorder %s287, 1
                  %s292 = sphi %s263, %s263
                  %s293 = sphi %s261, %s261
                $region70: #{repara_forward.1} parent=66 // loop_header_branch
                  %290 = sbr.rel (%p288) target = $region74
                $region71: #{repara_forward.1} parent=66 // loop_body
                  _
                $region72: #{repara_forward.1} parent=66 // loop_footer
                  %s291 = sadd.s32 1, %s287
                $region73: #{repara_forward.1} parent=66 // loop_footer_branch
                  %286 = sbr.rel target = $region69
                $region74: #{repara_forward.1} parent=66 // loop_exit
                  _
                %s295 = ssub.s32 16, 1
                loop: start=0, step=1, limit=1
                $region75: #{repara_forward.1} parent=66 // loop_pre_header
                  _
                $region76: #{repara_forward.1} parent=66 // loop_header
                  %s297 = sphi 0, %s301
                  %p298 = scmp.ge.s32.totalorder %s297, 1
                  %s302 = sphi %s263, %s263
                  %s303 = sphi %s261, %s261
                $region77: #{repara_forward.1} parent=66 // loop_header_branch
                  %300 = sbr.rel (%p298) target = $region81
                $region78: #{repara_forward.1} parent=66 // loop_body
                  %v304 = vld [vmem:[%s302] sm:%s295]
                  %305 = vst [vmem:[%s303] sm:%s295] %v304
                  %v306 = vld [vmem:[%s302 + $0xc] sm:%s295]
                  %307 = vst [vmem:[%s303 + $0x4] sm:%s295] %v306
                $region79: #{repara_forward.1} parent=66 // loop_footer
                  %s301 = sadd.s32 1, %s297
                $region80: #{repara_forward.1} parent=66 // loop_footer_branch
                  %296 = sbr.rel target = $region76
                $region81: #{repara_forward.1} parent=66 // loop_exit
                  _
              $region67: #{repara_forward.1} parent=51 // pred_fallthru
                _
            $region52: #{repara_forward.1} parent=47 // pred_fallthru
              _
            // Predicated region
            $region53: #{repara_forward.1} parent=47 // pred_check
              _
            $region54: #{repara_forward.1} parent=47 // pred_check_branch
              %269 = sbr.rel (0) target = $region56
            $region55: #{repara_forward.1} parent=47 // pred_region
              %s271 = ssub.s32 16, 1
              loop: start=0, step=1, limit=1
              $region57: #{repara_forward.1} parent=55 // loop_pre_header
                _
              $region58: #{repara_forward.1} parent=55 // loop_header
                %s273 = sphi 0, %s277
                %p274 = scmp.ge.s32.totalorder %s273, 1
                %s278 = sphi %s263, %s263
                %s279 = sphi %s261, %s261
              $region59: #{repara_forward.1} parent=55 // loop_header_branch
                %276 = sbr.rel (%p274) target = $region63
              $region60: #{repara_forward.1} parent=55 // loop_body
                %v280 = vld [vmem:[%s278] sm:%s271]
                %281 = vst [vmem:[%s279] sm:%s271] %v280
                %v282 = vld [vmem:[%s278 + $0xc] sm:%s271]
                %283 = vst [vmem:[%s279 + $0x4] sm:%s271] %v282
              $region61: #{repara_forward.1} parent=55 // loop_footer
                %s277 = sadd.s32 1, %s273
              $region62: #{repara_forward.1} parent=55 // loop_footer_branch
                %272 = sbr.rel target = $region58
              $region63: #{repara_forward.1} parent=55 // loop_exit
                _
            $region56: #{repara_forward.1} parent=47 // pred_fallthru
              _
          $region48: #{repara_forward.1} parent=43 // pred_fallthru
            _
          %308 = vnop
        $region44: #{repara_forward.1} parent=39 // pred_fallthru
          _
        // Predicated region
        $region82: #{repara_forward.1} parent=39 // pred_check
          %p309 = pneg %p186
        $region83: #{repara_forward.1} parent=39 // pred_check_branch
          %311 = sbr.rel (%p309) target = $region85
        $region84: #{repara_forward.1} parent=39 // pred_region
          %p312 = scmp.lt.s32.totalorder %s14, 2
          %s313 = scalar_select %p312, %s14, 2
          %s314 = smul.addr %s313, 8
          %s315 = scalar_lea.vmem %s7, %s314
        $region85: #{repara_forward.1} parent=39 // pred_fallthru
          _
      $region40: #{repara_forward.1} parent=5 // pred_fallthru
        _
      %p316 = scmp.le.s32.totalorder 1, %s14
      %p317 = scmp.lt.s32.totalorder %s14, 4
      %p318 = pnand %p316, %p317
      %p319 = pneg %p318
      // Predicated region
      $region86: #{repara_forward.1} parent=5 // pred_check
        _
      $region87: #{repara_forward.1} parent=5 // pred_check_branch
        %321 = sbr.rel (%p318) target = $region89
      $region88: #{repara_forward.1} parent=5 // pred_region
        %s322 = ssub.s32 %s14, 1
        %s323 = sand.u32 %s27, 1
        %s324 = sand.u32 %s27, 1
        %s325 = smul.addr %s324, 8
        %s326 = scalar_lea.vmem [#allocation2], %s325
        // Predicated region
        $region90: #{repara_forward.1} parent=88 // pred_check
          %p327 = pneg %p40
        $region91: #{repara_forward.1} parent=88 // pred_check_branch
          %329 = sbr.rel (%p327) target = $region93
        $region92: #{repara_forward.1} parent=88 // pred_region
          _
        $region93: #{repara_forward.1} parent=88 // pred_fallthru
          _
        %s330 = sand.u32 %s27, 1
        %s331 = sand.u32 %s27, 1
        %s332 = smul.addr %s331, 8
        %s333 = scalar_lea.vmem [#allocation2], %s332
        %p334 = pneg %p40
        %p335 = pneg %p37
        %p336 = pneg %p61
        %p337 = pneg %p58
        %p338 = pneg %p82
        %p339 = pneg %p79
        %p340 = pneg %p103
        %p341 = pneg %p100
        %p342 = pneg %p124
        %p343 = pneg %p121
        %p344 = pneg %p145
        %p345 = pneg %p142
        %p346 = pneg %p166
        %p347 = pneg %p163
        %p348 = scmp.lt.s32.totalorder %s19, 2
        %s349 = scalar_select %p348, %s19, 2
        %s350 = smul.addr %s349, 8
        %s351 = scalar_lea.vmem %s7, %s350
        %p352 = pneg %p192
        %p353 = pneg %p189
        %p354 = pneg %p218
        %p355 = pneg %p215
        %s356 = sand.u32 %s205, 1
        %s357 = sand.u32 %s205, 1
        %s358 = smul.addr %s357, 24
        %s359 = scalar_lea.vmem [#allocation3], %s358
        %p360 = scmp.lt.s32.totalorder %s19, 2
        %s361 = scalar_select %p360, %s19, 2
        %s362 = smul.addr %s361, 8
        %s363 = scalar_lea.vmem %s7, %s362
        %v365 = vld [vmem:[%s2] sm:$0xff]
        %v366 = vld [vmem:[%s2 + $0x8] sm:$0xff]
        %v367 = vld [vmem:[%s2 + $0x10] sm:$0xff]
        %v368 = vld [vmem:[%s2 + $0x18] sm:$0xff]
        %v369 = vld [vmem:[%s4] sm:$0xff]
        %v370 = vld [vmem:[%s6] sm:$0xff]
        %v371 = vld [vmem:[%s6 + $0x8] sm:$0xff]
        %v372 = vld [vmem:[%s1] sm:$0xf]
        %v373 = vld [vmem:[%s1 + $0x4] sm:$0xf]
        %v374 = vld [vmem:[%s1 + $0x8] sm:$0xf]
        %v375 = vld [vmem:[%s1 + $0xc] sm:$0xf]
        %v376 = vld [vmem:[%s326] sm:$0xf]
        %v377 = vld [vmem:[%s326 + $0x4] sm:$0xf]
        %379 = vset.pattern.permute.xlu0 0
        %380 = vperm.xlu0 %379, %v365
        %v381 = vpop.permute.xlu0 %380
        %384 = vset.pattern.permute.xlu0 0
        %385 = vperm.xlu0 %384, %v366
        %v386 = vpop.permute.xlu0 %385
        %389 = vset.pattern.permute.xlu0 0
        %390 = vperm.xlu0 %389, %v367
        %v391 = vpop.permute.xlu0 %390
        %394 = vset.pattern.permute.xlu0 0
        %395 = vperm.xlu0 %394, %v368
        %v396 = vpop.permute.xlu0 %395
        %v402 = vunpack.c.l.b16 %v372
        %v403 = vunpack.c.l.b16 %v373
        %v404 = vunpack.c.l.b16 %v374
        %v405 = vunpack.c.l.b16 %v375
        %v406 = vpack.c.b16 %v403, %v402
        %v407 = vpack.c.b16 %v405, %v404
        %v410 = vunpack.c.l.b16 %v376
        %v411 = vunpack.c.l.b16 %v377
        %v412 = vpack.c.b16 %v411, %v410
        %vm414 = vcmask 130048
        %v416 = vsel %vm414, %v406, 0
        %v419 = vsel %vm414, %v407, 0
        %421 = vmatpush.bf16.msra.mxu0 0
        %422 = vmatpush.bf16.msra.mxu0 0
        %423 = vmatpush.bf16.msra.mxu0 0
        %424 = vmatpush.bf16.msra.mxu0 0
        %425 = vmatpush.bf16.msra.mxu0 0
        %426 = vmatpush.bf16.msra.mxu0 0
        %427 = vmatpush.bf16.msra.mxu0 0
        %428 = vmatpush.bf16.msra.mxu0 %v412
        %429 = vmatmul.bf16.gmra.mxu0 %v416
        %v430 = vpop.f32.mrf.mxu0
        %v431 = vadd.f32 %v381, %v430
        %v432 = vpop.f32.mrf.mxu0
        %v433 = vadd.f32 %v386, %v432
        %434 = vmatmul.bf16.gmra.mxu0 %v419
        %v435 = vpop.f32.mrf.mxu0
        %v436 = vadd.f32 %v391, %v435
        %v437 = vpop.f32.mrf.mxu0
        %v438 = vadd.f32 %v396, %v437
        %439 = vdwg.mxu0
        %v440 = vmax.f32 %v431, 0.0
        %v441 = vmax.f32 %v433, 0.0
        %v442 = vmax.f32 %v436, 0.0
        %v443 = vmax.f32 %v438, 0.0
        %v444 = vld [vmem:[%s3] sm:$0xf]
        %v445 = vpack.c.bf16 %v441, %v440
        %v446 = vpack.c.bf16 %v443, %v442
        %448 = vset.pattern.permute.xlu0 0
        %449 = vperm.xlu0 %448, %v369
        %v450 = vpop.permute.xlu0 %449
        %vm452 = vcmask 261120
        %v454 = vsel %vm452, %v444, 0
        %456 = vmatpush.bf16.msra.mxu0 0
        %457 = vmatpush.bf16.msra.mxu0 0
        %458 = vmatpush.bf16.msra.mxu0 0
        %459 = vmatpush.bf16.msra.mxu0 0
        %460 = vmatpush.bf16.msra.mxu0 0
        %461 = vmatpush.bf16.msra.mxu0 0
        %462 = vmatpush.bf16.msra.mxu0 %v446
        %463 = vmatpush.bf16.msra.mxu0 %v445
        %464 = vmatmul.bf16.gmra.mxu0 %v454
        %v465 = vpop.f32.mrf.mxu0
        %v466 = vadd.f32 %v450, %v465
        %v467 = vpop.f32.mrf.mxu0
        %468 = vdwg.mxu0
        %v469 = vmax.f32 %v466, 0.0
        %v470 = vld [vmem:[%s5] sm:$0xff]
        %v471 = vld [vmem:[%s5 + $0x8] sm:$0xff]
        %473 = vset.pattern.permute.xlu0 0
        %474 = vperm.xlu0 %473, %v370
        %v475 = vpop.permute.xlu0 %474
        %478 = vset.pattern.permute.xlu0 0
        %479 = vperm.xlu0 %478, %v371
        %v480 = vpop.permute.xlu0 %479
        %vm482 = vcmask 64512
        %v484 = vsel %vm482, %v470, 0
        %v487 = vsel %vm482, %v471, 0
        %489 = vmatpush.msra.mxu0 0.0
        %490 = vmatpush.msra.mxu0 0.0
        %491 = vmatpush.msra.mxu0 0.0
        %492 = vmatpush.msra.mxu0 0.0
        %493 = vmatpush.msra.mxu0 0.0
        %494 = vmatpush.msra.mxu0 0.0
        %495 = vmatpush.msra.mxu0 0.0
        %496 = vmatpush.msra.mxu0 0.0
        %497 = vmatpush.msra.mxu0 0.0
        %498 = vmatpush.msra.mxu0 0.0
        %499 = vmatpush.msra.mxu0 0.0
        %500 = vmatpush.msra.mxu0 0.0
        %501 = vmatpush.msra.mxu0 0.0
        %502 = vmatpush.msra.mxu0 0.0
        %503 = vmatpush.msra.mxu0 0.0
        %504 = vmatpush.msra.mxu0 %v469
        %505 = vmatmul.f32.gmra.mxu0 %v484
        %v506 = vpop.f32.mrf.mxu0
        %v507 = vadd.f32 %v475, %v506
        %508 = vmatmul.f32.gmra.mxu0 %v487
        %v509 = vpop.f32.mrf.mxu0
        %v510 = vadd.f32 %v480, %v509
        %511 = vdwg.mxu0
        %v512 = vld [vmem:[%s363] sm:$0xff]
        %v513 = vmul.f32 %v510, 0.5
        %v514 = vmul.f32 %v513, 1.442695
        %v515 = vpow.pop %v514
        %v516 = vmul.f32 %v512, %v515
        %v517 = vadd.f32 %v507, %v516
        %518 = vst [vmem:[%s359] sm:$0xff] %v517
        %519 = vst [vmem:[%s359 + $0x8] sm:$0xff] %v507
        %520 = vst [vmem:[%s359 + $0x10] sm:$0xff] %v510
        %s521 = sand.u32 %s205, 1
        %s522 = sand.u32 %s205, 1
        %s523 = smul.addr %s522, 24
        %s524 = scalar_lea.vmem [#allocation3], %s523
        // Predicated region
        $region94: #{repara_forward.1} parent=88 // pred_check
          %p525 = pneg %p215
        $region95: #{repara_forward.1} parent=88 // pred_check_branch
          %527 = sbr.rel (%p525) target = $region97
        $region96: #{repara_forward.1} parent=88 // pred_region
          %s528 = smul.addr %s19, 8
          %s529 = scalar_lea.vmem %s8, %s528
          // Predicated region
          $region98: #{repara_forward.1} parent=96 // pred_check
            _
          $region99: #{repara_forward.1} parent=96 // pred_check_branch
            %531 = sbr.rel (0) target = $region101
          $region100: #{repara_forward.1} parent=96 // pred_region
            // Predicated region
            $region102: #{repara_forward.1} parent=100 // pred_check
              _
            $region103: #{repara_forward.1} parent=100 // pred_check_branch
              %533 = sbr.rel (0) target = $region105
            $region104: #{repara_forward.1} parent=100 // pred_region
              // Predicated region
              $region117: #{repara_forward.1} parent=104 // pred_check
                _
              $region118: #{repara_forward.1} parent=104 // pred_check_branch
                %553 = sbr.rel (0) target = $region120
              $region119: #{repara_forward.1} parent=104 // pred_region
                loop: start=0, step=1, limit=1
                $region121: #{repara_forward.1} parent=119 // loop_pre_header
                  _
                $region122: #{repara_forward.1} parent=119 // loop_header
                  %s555 = sphi 0, %s559
                  %p556 = scmp.ge.s32.totalorder %s555, 1
                  %s560 = sphi %s524, %s524
                  %s561 = sphi %s529, %s529
                $region123: #{repara_forward.1} parent=119 // loop_header_branch
                  %558 = sbr.rel (%p556) target = $region127
                $region124: #{repara_forward.1} parent=119 // loop_body
                  %v562 = vld [vmem:[%s560] sm:$0xff]
                  %563 = vst [vmem:[%s561] sm:$0xff] %v562
                  %v564 = vld [vmem:[%s560 + $0x8] sm:$0xff]
                  %565 = vst [vmem:[%s561 + $0x18] sm:$0xff] %v564
                  %v566 = vld [vmem:[%s560 + $0x10] sm:$0xff]
                  %567 = vst [vmem:[%s561 + $0x30] sm:$0xff] %v566
                $region125: #{repara_forward.1} parent=119 // loop_footer
                  %s559 = sadd.s32 1, %s555
                $region126: #{repara_forward.1} parent=119 // loop_footer_branch
                  %554 = sbr.rel target = $region122
                $region127: #{repara_forward.1} parent=119 // loop_exit
                  _
              $region120: #{repara_forward.1} parent=104 // pred_fallthru
                _
              // Predicated region
              $region128: #{repara_forward.1} parent=104 // pred_check
                _
              $region129: #{repara_forward.1} parent=104 // pred_check_branch
                %569 = sbr.rel target = $region131
              $region130: #{repara_forward.1} parent=104 // pred_region
                _
              $region131: #{repara_forward.1} parent=104 // pred_fallthru
                _
            $region105: #{repara_forward.1} parent=100 // pred_fallthru
              _
            // Predicated region
            $region106: #{repara_forward.1} parent=100 // pred_check
              _
            $region107: #{repara_forward.1} parent=100 // pred_check_branch
              %535 = sbr.rel target = $region109
            $region108: #{repara_forward.1} parent=100 // pred_region
              %s537 = ssub.s32 256, 1
              loop: start=0, step=1, limit=1
              $region110: #{repara_forward.1} parent=108 // loop_pre_header
                _
              $region111: #{repara_forward.1} parent=108 // loop_header
                %s539 = sphi 0, %s543
                %p540 = scmp.ge.s32.totalorder %s539, 1
                %s544 = sphi %s524, %s524
                %s545 = sphi %s529, %s529
              $region112: #{repara_forward.1} parent=108 // loop_header_branch
                %542 = sbr.rel (%p540) target = $region116
              $region113: #{repara_forward.1} parent=108 // loop_body
                %v546 = vld [vmem:[%s544] sm:%s537]
                %547 = vst [vmem:[%s545] sm:%s537] %v546
                %v548 = vld [vmem:[%s544 + $0x8] sm:%s537]
                %549 = vst [vmem:[%s545 + $0x18] sm:%s537] %v548
                %v550 = vld [vmem:[%s544 + $0x10] sm:%s537]
                %551 = vst [vmem:[%s545 + $0x30] sm:%s537] %v550
              $region114: #{repara_forward.1} parent=108 // loop_footer
                %s543 = sadd.s32 1, %s539
              $region115: #{repara_forward.1} parent=108 // loop_footer_branch
                %538 = sbr.rel target = $region111
              $region116: #{repara_forward.1} parent=108 // loop_exit
                _
            $region109: #{repara_forward.1} parent=100 // pred_fallthru
              _
          $region101: #{repara_forward.1} parent=96 // pred_fallthru
            _
          %570 = vnop
        $region97: #{repara_forward.1} parent=88 // pred_fallthru
          _
      $region89: #{repara_forward.1} parent=5 // pred_fallthru
        _
      %p571 = scmp.le.s32.totalorder 2, %s14
      // Predicated region
      $region132: #{repara_forward.1} parent=5 // pred_check
        %p572 = pneg %p571
      $region133: #{repara_forward.1} parent=5 // pred_check_branch
        %574 = sbr.rel (%p572) target = $region135
      $region134: #{repara_forward.1} parent=5 // pred_region
        %s575 = ssub.s32 %s14, 2
        // Predicated region
        $region136: #{repara_forward.1} parent=134 // pred_check
          %p576 = pneg %p221
        $region137: #{repara_forward.1} parent=134 // pred_check_branch
          %578 = sbr.rel (%p576) target = $region139
        $region138: #{repara_forward.1} parent=134 // pred_region
          %s579 = sand.u32 %s206, 1
          %s580 = sand.u32 %s206, 1
          %s581 = smul.addr %s580, 24
          %s582 = scalar_lea.vmem [#allocation3], %s581
        $region139: #{repara_forward.1} parent=134 // pred_fallthru
          _
      $region135: #{repara_forward.1} parent=5 // pred_fallthru
        _
    $region6: #{repara_forward.1} parent=1 // loop_footer
      %s18 = sadd.s32 1, %s14
    $region7: #{repara_forward.1} parent=1 // loop_footer_branch
      %13 = sbr.rel target = $region3
    $region8: #{repara_forward.1} parent=1 // loop_exit
      _

</llo_original>
